<compile_context>
chip_gen: v5e
topology: v5e:2x2
jax: 0.10.0
libtpu: 0.0.40
codegen_flags: <defaults>
</compile_context>

<pallas_src>
import numpy as np
import jax
import jax.numpy as jnp
from jax.experimental import pallas as pl
from jax.experimental.pallas import tpu as pltpu

WIN_SIZE = 11
WIN_SIGMA = 1.5
DATA_RANGE = 1.0
K1, K2 = 0.01, 0.03
C1 = (K1 * DATA_RANGE) ** 2
C2 = (K2 * DATA_RANGE) ** 2


def _gaussian_1d(size, sigma):
    coords = np.arange(size, dtype=np.float64) - size // 2
    g = np.exp(-(coords ** 2) / (2.0 * sigma * sigma))
    g /= g.sum()
    return g.astype(np.float32)


_WIN = tuple(float(v) for v in _gaussian_1d(WIN_SIZE, WIN_SIGMA))


def _banded_matrix(w, w_out):
    """Kw[j+k, j] = win[k]  -> 'valid' 1-D Gaussian conv as a matmul img2d @ Kw."""
    kw = np.zeros((w, w_out), dtype=np.float32)
    win = _gaussian_1d(WIN_SIZE, WIN_SIGMA)
    for j in range(w_out):
        kw[j:j + WIN_SIZE, j] = win
    return kw


def _choose_block_nc(nc, h, w):
    """Largest divisor of NC that keeps per-block VMEM modest and leaves >=2
    grid steps when possible (so v7x megacore / pipelining has work to shard)."""
    budget = 6 * 1024 * 1024            # rough per-block working-set target
    est = lambda b: 100 * b * h * w     # ~ inputs (dbl-buffered) + f32 temporaries
    cap = max(1, nc // 2)
    best = 1
    for d in range(1, nc + 1):
        if nc % d == 0 and d <= cap and est(d) <= budget:
            best = d
    return best


def _partial_sum_tile(s):
    """Lane-dense (1, 8, 128) tile holding scalar s at [0,0,0], zeros elsewhere."""
    sub = jax.lax.broadcasted_iota(jnp.int32, (1, 8, 128), 1)
    lane = jax.lax.broadcasted_iota(jnp.int32, (1, 8, 128), 2)
    return jnp.where((sub == 0) & (lane == 0), s, 0.0).astype(jnp.float32)


# --------------------------------------------------------------------------
# SSIM loss kernel
# --------------------------------------------------------------------------
def _ssim_kernel(x_ref, y_ref, kw_ref, o_ref):
    x = x_ref[...].astype(jnp.float32)          # (bnc, H, W)
    y = y_ref[...].astype(jnp.float32)
    kw = kw_ref[...]                            # (W, w_out) f32 banded Gaussian
    bnc, H, W = x.shape
    w_out = kw.shape[1]
    h_out = H - WIN_SIZE + 1

    # Horizontal pass: single MXU matmul for all 5 filtered quantities,
    # with NC*H folded into the M dimension (sublane dense).
    stacked = jnp.concatenate(
        [x.reshape(bnc * H, W),
         y.reshape(bnc * H, W),
         (x * x).reshape(bnc * H, W),
         (y * y).reshape(bnc * H, W),
         (x * y).reshape(bnc * H, W)], axis=0)                    # (5*bnc*H, W)
    th = jnp.dot(stacked, kw, preferred_element_type=jnp.float32)  # (5*bnc*H, w_out)
    th = th.reshape(5 * bnc, H, w_out)

    # Vertical pass: 11 sublane-shifted adds on the VPU (cheap direction).
    vout = None
    for k, wgt in enumerate(_WIN):
        term = th[:, k:k + h_out, :] * wgt
        vout = term if vout is None else vout + term               # (5*bnc, h_out, w_out)

    mu1 = vout[0 * bnc:1 * bnc]
    mu2 = vout[1 * bnc:2 * bnc]
    exx = vout[2 * bnc:3 * bnc]
    eyy = vout[3 * bnc:4 * bnc]
    exy = vout[4 * bnc:5 * bnc]

    mu1_sq = mu1 * mu1
    mu2_sq = mu2 * mu2
    mu1_mu2 = mu1 * mu2
    sigma1_sq = exx - mu1_sq
    sigma2_sq = eyy - mu2_sq
    sigma12 = exy - mu1_mu2

    # Fused: one reciprocal instead of two divisions.
    num = (2.0 * mu1_mu2 + C1) * (2.0 * sigma12 + C2)
    den = (mu1_sq + mu2_sq + C1) * (sigma1_sq + sigma2_sq + C2)
    ssim_map = num * pl.reciprocal(den)

    o_ref[...] = _partial_sum_tile(jnp.sum(ssim_map))


def ssim_loss(x, y):
    """x, y: NCHW arrays in [0, 1]. Returns scalar 1 - mean(SSIM)."""
    N, C, H, W = x.shape
    assert H >= WIN_SIZE and W >= WIN_SIZE, "spatial dims must be >= win_size (11)"
    NC = N * C
    h_out = H - WIN_SIZE + 1
    w_out = W - WIN_SIZE + 1

    xr = x.reshape(NC, H, W)        # no dtype cast here: cast happens in-kernel
    yr = y.reshape(NC, H, W)
    kw = jnp.asarray(_banded_matrix(W, w_out))

    bnc = _choose_block_nc(NC, H, W)
    nblk = NC // bnc

    flops = int(2 * 5 * NC * H * W * w_out            # horizontal matmul
                + 2 * WIN_SIZE * 5 * NC * h_out * w_out  # vertical pass
                + 20 * NC * h_out * w_out)               # ssim map math
    bytes_accessed = int(2 * NC * H * W * x.dtype.itemsize
                         + W * w_out * 4 + nblk * 8 * 128 * 4)

    partials = pl.pallas_call(
        _ssim_kernel,
        out_shape=jax.ShapeDtypeStruct((nblk, 8, 128), jnp.float32),
        grid_spec=pltpu.PrefetchScalarGridSpec(
            num_scalar_prefetch=0,
            grid=(nblk,),
            in_specs=[
                pl.BlockSpec((bnc, H, W), lambda i: (i, 0, 0)),
                pl.BlockSpec((bnc, H, W), lambda i: (i, 0, 0)),
                pl.BlockSpec((W, w_out), lambda i: (0, 0)),
            ],
            out_specs=pl.BlockSpec((1, 8, 128), lambda i: (i, 0, 0)),
        ),
        compiler_params=pltpu.CompilerParams(dimension_semantics=("parallel",)),
        cost_estimate=pl.CostEstimate(flops=flops, transcendentals=0,
                                      bytes_accessed=bytes_accessed),
    )(xr, yr, kw)

    mean_ssim = jnp.sum(partials) / float(NC * h_out * w_out)
    return 1.0 - mean_ssim


# --------------------------------------------------------------------------
# L1 loss kernel (mean absolute error)
# --------------------------------------------------------------------------
def _l1_kernel(x_ref, y_ref, o_ref):
    x = x_ref[...].astype(jnp.float32)
    y = y_ref[...].astype(jnp.float32)
    o_ref[...] = _partial_sum_tile(jnp.sum(jnp.abs(x - y)))


def l1_loss(x, y):
    N, C, H, W = x.shape
    NC = N * C
    xr = x.reshape(NC, H, W)
    yr = y.reshape(NC, H, W)

    bnc = _choose_block_nc(NC, H, W)
    nblk = NC // bnc

    partials = pl.pallas_call(
        _l1_kernel,
        out_shape=jax.ShapeDtypeStruct((nblk, 8, 128), jnp.float32),
        grid_spec=pltpu.PrefetchScalarGridSpec(
            num_scalar_prefetch=0,
            grid=(nblk,),
            in_specs=[
                pl.BlockSpec((bnc, H, W), lambda i: (i, 0, 0)),
                pl.BlockSpec((bnc, H, W), lambda i: (i, 0, 0)),
            ],
            out_specs=pl.BlockSpec((1, 8, 128), lambda i: (i, 0, 0)),
        ),
        compiler_params=pltpu.CompilerParams(dimension_semantics=("parallel",)),
        cost_estimate=pl.CostEstimate(flops=int(3 * NC * H * W), transcendentals=0,
                                      bytes_accessed=int(2 * NC * H * W * x.dtype.itemsize)),
    )(xr, yr)

    return jnp.sum(partials) / float(NC * H * W)


# --------------------------------------------------------------------------
# MixLoss: weighted sum of component losses (matches PyTorch module forward)
# --------------------------------------------------------------------------
class MixLoss:
    def __init__(self, losses, weights):
        self.losses = list(losses)
        self.weights = list(weights)

    def __call__(self, input, target):
        return sum(l(input, target) * w for l, w in zip(self.losses, self.weights))


if __name__ == "__main__":
    key = jax.random.PRNGKey(0)
    k1, k2 = jax.random.split(key)
    # NCHW, num_channels=3, spatial >= win_size=11.
    x = jax.random.uniform(k1, (2, 3, 16, 16), dtype=jnp.float32)
    y = jax.random.uniform(k2, (2, 3, 16, 16), dtype=jnp.float32)

    mix = MixLoss(losses=[l1_loss, ssim_loss], weights=[0.16, 0.84])
    loss = jax.block_until_ready(mix(x, y))

    assert loss.shape == () or loss.size == 1
    assert bool(jnp.isfinite(loss))
    print("KERNEL_OK")
</pallas_src>

<mosaic_0001>
module attributes {stable_mosaic.version = 11 : i64} {
  func.func @_l1_kernel(%arg0: i32, %arg1: memref<3x16x16xf32, #tpu.memory_space<vmem>>, %arg2: memref<3x16x16xf32, #tpu.memory_space<vmem>>, %arg3: memref<1x8x128xf32, #tpu.memory_space<vmem>>) attributes {dimension_semantics = [#tpu.dimension_semantics<parallel>], iteration_bounds = array<i64: 2>, scalar_prefetch = 0 : i64, scratch_operands = 0 : i64, tpu.core_type = #tpu.core_type<tc>, window_params = [{transform_indices = @transform_0, window_bounds = array<i64: 3, 16, 16>}, {transform_indices = @transform_1, window_bounds = array<i64: 3, 16, 16>}, {transform_indices = @transform_2, window_bounds = array<i64: 1, 8, 128>}]} {
    %c0 = arith.constant 0 : index
    %c0_0 = arith.constant 0 : index
    %c0_1 = arith.constant 0 : index
    %0 = vector.load %arg1[%c0, %c0_0, %c0_1] : memref<3x16x16xf32, #tpu.memory_space<vmem>>, vector<3x16x16xf32>
    %c0_2 = arith.constant 0 : index
    %c0_3 = arith.constant 0 : index
    %c0_4 = arith.constant 0 : index
    %1 = vector.load %arg2[%c0_2, %c0_3, %c0_4] : memref<3x16x16xf32, #tpu.memory_space<vmem>>, vector<3x16x16xf32>
    %2 = arith.subf %0, %1 : vector<3x16x16xf32>
    %3 = math.absf %2 : vector<3x16x16xf32>
    %4 = vector.shape_cast %3 : vector<3x16x16xf32> to vector<1x3x16x16xf32>
    %cst = arith.constant dense<0.000000e+00> : vector<1xf32>
    %5 = vector.multi_reduction <add>, %4, %cst [1, 2, 3] : vector<1x3x16x16xf32> to vector<1xf32>
    %6 = vector.shape_cast %5 : vector<1xf32> to vector<1x1x1x1xf32>
    %7 = vector.extract %6[0, 0, 0, 0] : f32 from vector<1x1x1x1xf32>
    %8 = tpu.iota {dimensions = array<i32: 1>} : vector<1x8x128xi32>
    %9 = tpu.iota {dimensions = array<i32: 2>} : vector<1x8x128xi32>
    %c0_i32 = arith.constant 0 : i32
    %10 = vector.broadcast %c0_i32 : i32 to vector<1x8x128xi32>
    %11 = arith.cmpi eq, %8, %10 : vector<1x8x128xi32>
    %c0_i32_5 = arith.constant 0 : i32
    %12 = vector.broadcast %c0_i32_5 : i32 to vector<1x8x128xi32>
    %13 = arith.cmpi eq, %9, %12 : vector<1x8x128xi32>
    %14 = arith.andi %11, %13 : vector<1x8x128xi1>
    %cst_6 = arith.constant 0.000000e+00 : f32
    %15 = vector.broadcast %7 : f32 to vector<1x8x128xf32>
    %16 = vector.broadcast %cst_6 : f32 to vector<1x8x128xf32>
    %17 = arith.select %14, %15, %16 : vector<1x8x128xi1>, vector<1x8x128xf32>
    %c0_7 = arith.constant 0 : index
    %c0_8 = arith.constant 0 : index
    %c0_9 = arith.constant 0 : index
    %18 = vector.load %arg3[%c0_7, %c0_8, %c0_9] : memref<1x8x128xf32, #tpu.memory_space<vmem>>, vector<1x8x128xf32>
    tpu.vector_store %arg3[%c0_7, %c0_8, %c0_9], %17 {strides = array<i32>} : memref<1x8x128xf32, #tpu.memory_space<vmem>>, vector<1x8x128xf32>,
    return
  }
  func.func @transform_0(%arg0: i32) -> (i32, i32, i32) {
    %c0_i32 = arith.constant 0 : i32
    %c0_i32_0 = arith.constant 0 : i32
    %c0_i32_1 = arith.constant 0 : i32
    return %arg0, %c0_i32, %c0_i32_0 : i32, i32, i32
  }
  func.func @transform_1(%arg0: i32) -> (i32, i32, i32) {
    %c0_i32 = arith.constant 0 : i32
    %c0_i32_0 = arith.constant 0 : i32
    %c0_i32_1 = arith.constant 0 : i32
    return %arg0, %c0_i32, %c0_i32_0 : i32, i32, i32
  }
  func.func @transform_2(%arg0: i32) -> (i32, i32, i32) {
    %c0_i32 = arith.constant 0 : i32
    %c0_i32_0 = arith.constant 0 : i32
    %c0_i32_1 = arith.constant 0 : i32
    return %arg0, %c0_i32, %c0_i32_0 : i32, i32, i32
  }
}

</mosaic_0001>

<llo_original>
// kernel: tpu_custom_call.1
$region0: #{tpu_custom_call.1}
  #allocation0 [shape = 'u32[]', space=smem, size = 0x4, offset = 0x4, fixed_abs, tag = 'smem constant byte address 0x4 - core index']
  #allocation1 [shape = 'u32[72,128]{1,0:T(1,128)}', space=vmem, size = 0x9000, scoped, tag = 'internal scratch']
  %s0 = inlined_call_operand.hbm [shape: f32[6,16,16], index: 0, kind: input, shape index: {}]
  %s1 = inlined_call_operand.hbm [shape: f32[6,16,16], index: 1, kind: input, shape index: {}]
  %s2 = inlined_call_operand.hbm [shape: f32[2,8,128], index: 2, kind: output, shape index: {}]
  %s3 = sld [smem:[#allocation0]]
  $region49: #{tpu_custom_call.1} parent=0
    _
  %s5 = ssub.s32 1, %s3
  %s6 = scalar_select 0, %s5, %s3
  $region1: #{tpu_custom_call.1} parent=0
    #allocation2 [shape = 'u8[49152]{0}', space=vmem, size = 0xc000, scoped, tag = 'input window, operand 0']
    #allocation3 [shape = 's32[2]{0}', space=sflag, size = 0x8, scoped, tag = 'scoped memory for tpu_custom_call.1']
    #allocation4 [shape = 's32[2]{0}', space=sflag, size = 0x8, scoped, tag = 'scoped memory for tpu_custom_call.1']
    #allocation5 [shape = 'u8[49152]{0}', space=vmem, size = 0xc000, scoped, tag = 'input window, operand 1']
    #allocation6 [shape = 's32[2]{0}', space=sflag, size = 0x8, scoped, tag = 'scoped memory for tpu_custom_call.1']
    #allocation7 [shape = 'u8[8192]{0}', space=vmem, size = 0x2000, scoped, tag = 'output window, operand 0']
    %7 = vsyncpa [#allocation3], 0
    %s8 = scalar_lea.sflag [#allocation3], 1
    %9 = vsyncpa %s8, 0
    %10 = vsyncpa [#allocation6], 0
    %s11 = scalar_lea.sflag [#allocation6], 1
    %12 = vsyncpa %s11, 0
    %13 = vsyncpa [#allocation4], 0
    %s14 = scalar_lea.sflag [#allocation4], 1
    %15 = vsyncpa %s14, 0
    loop: start=0, step=1, limit=4
    $region2: #{tpu_custom_call.1} parent=1 // loop_pre_header
      _
    $region3: #{tpu_custom_call.1} parent=1 // loop_header
      %s17 = sphi 0, %s21
      %p18 = scmp.ge.s32.totalorder %s17, 4
      %s27 = sphi 0, %s29
      %s30 = sphi 0, %s27
      %s31 = sphi 0, %s30
      %s47 = sphi 0, %s31
      %s53 = sphi 0, %s55
      %s56 = sphi 0, %s53
      %s57 = sphi 0, %s56
      %s73 = sphi 0, %s57
      %s79 = sphi 0, %s81
      %s82 = sphi 0, %s79
      %s83 = sphi 0, %s82
      %s99 = sphi 0, %s83
    $region4: #{tpu_custom_call.1} parent=1 // loop_header_branch
      %20 = sbr.rel (%p18) target = $region8
    $region5: #{tpu_custom_call.1} parent=1 // loop_body
      %s22 = ssub.s32 %s17, 1
      %s23 = ssub.s32 %s17, 2
      %s24 = sadd.s32 %s17, 1
      %s25 = ssub.s32 %s17, %s24
      %p26 = scmp.eq.s32.totalorder %s25, 0
      %s28 = sadd.s32 %s27, 1
      %s29 = scalar_select %p26, %s27, %s28
      %p32 = pneg %p26
      %p33 = scmp.eq.s32.totalorder %s17, 1
      %p34 = por %p32, %p33
      %p35 = scmp.ne.s32.totalorder %s27, %s30
      %p36 = scmp.eq.s32.totalorder %s17, 0
      %p37 = por %p35, %p36
      %p38 = scmp.ne.s32.totalorder %s27, %s30
      %p39 = scmp.eq.s32.totalorder %s22, 1
      %p40 = por %p38, %p39
      %p41 = scmp.ne.s32.totalorder %s30, %s31
      %p42 = scmp.eq.s32.totalorder %s22, 0
      %p43 = por %p41, %p42
      %p44 = scmp.ne.s32.totalorder %s30, %s31
      %p45 = scmp.eq.s32.totalorder %s23, 1
      %p46 = por %p44, %p45
      %p48 = scmp.ne.s32.totalorder %s31, %s47
      %p49 = scmp.eq.s32.totalorder %s23, 0
      %p50 = por %p48, %p49
      %s51 = ssub.s32 %s17, %s24
      %p52 = scmp.eq.s32.totalorder %s51, 0
      %s54 = sadd.s32 %s53, 1
      %s55 = scalar_select %p52, %s53, %s54
      %p58 = pneg %p52
      %p59 = scmp.eq.s32.totalorder %s17, 1
      %p60 = por %p58, %p59
      %p61 = scmp.ne.s32.totalorder %s53, %s56
      %p62 = scmp.eq.s32.totalorder %s17, 0
      %p63 = por %p61, %p62
      %p64 = scmp.ne.s32.totalorder %s53, %s56
      %p65 = scmp.eq.s32.totalorder %s22, 1
      %p66 = por %p64, %p65
      %p67 = scmp.ne.s32.totalorder %s56, %s57
      %p68 = scmp.eq.s32.totalorder %s22, 0
      %p69 = por %p67, %p68
      %p70 = scmp.ne.s32.totalorder %s56, %s57
      %p71 = scmp.eq.s32.totalorder %s23, 1
      %p72 = por %p70, %p71
      %p74 = scmp.ne.s32.totalorder %s57, %s73
      %p75 = scmp.eq.s32.totalorder %s23, 0
      %p76 = por %p74, %p75
      %s77 = ssub.s32 %s17, %s24
      %p78 = scmp.eq.s32.totalorder %s77, 0
      %s80 = sadd.s32 %s79, 1
      %s81 = scalar_select %p78, %s79, %s80
      %p84 = pneg %p78
      %p85 = scmp.eq.s32.totalorder %s17, 1
      %p86 = por %p84, %p85
      %p87 = scmp.ne.s32.totalorder %s79, %s82
      %p88 = scmp.eq.s32.totalorder %s17, 0
      %p89 = por %p87, %p88
      %p90 = scmp.ne.s32.totalorder %s79, %s82
      %p91 = scmp.eq.s32.totalorder %s22, 1
      %p92 = por %p90, %p91
      %p93 = scmp.ne.s32.totalorder %s82, %s83
      %p94 = scmp.eq.s32.totalorder %s22, 0
      %p95 = por %p93, %p94
      %p96 = scmp.ne.s32.totalorder %s82, %s83
      %p97 = scmp.eq.s32.totalorder %s23, 1
      %p98 = por %p96, %p97
      %p100 = scmp.ne.s32.totalorder %s83, %s99
      %p101 = scmp.eq.s32.totalorder %s23, 0
      %p102 = por %p100, %p101
      %p103 = scmp.le.s32.totalorder 1, %s17
      %p104 = scmp.lt.s32.totalorder %s17, 3
      %p105 = pnand %p103, %p104
      %p106 = pneg %p105
      // Predicated region
      $region9: #{tpu_custom_call.1} parent=5 // pred_check
        _
      $region10: #{tpu_custom_call.1} parent=5 // pred_check_branch
        %108 = sbr.rel (%p105) target = $region12
      $region11: #{tpu_custom_call.1} parent=5 // pred_region
        %s109 = ssub.s32 %s17, 1
      $region12: #{tpu_custom_call.1} parent=5 // pred_fallthru
        _
      %p110 = scmp.lt.s32.totalorder %s17, 2
      // Predicated region
      $region13: #{tpu_custom_call.1} parent=5 // pred_check
        %p111 = pneg %p110
      $region14: #{tpu_custom_call.1} parent=5 // pred_check_branch
        %113 = sbr.rel (%p111) target = $region16
      $region15: #{tpu_custom_call.1} parent=5 // pred_region
        // Predicated region
        $region17: #{tpu_custom_call.1} parent=15 // pred_check
          %p114 = pneg %p37
        $region18: #{tpu_custom_call.1} parent=15 // pred_check_branch
          %116 = sbr.rel (%p114) target = $region20
        $region19: #{tpu_custom_call.1} parent=15 // pred_region
          %s117 = sand.u32 %s27, 1
          %s118 = scalar_lea.sflag [#allocation3], %s117
          %s119 = sand.u32 %s27, 1
          %s120 = smul.addr %s119, 48
          %s121 = scalar_lea.vmem [#allocation2], %s120
          %s122 = smul.u32 3, %s17
          %124 = vsyncadd %s118, 0
          %s125 = smul.addr %s122, 2
          %s126 = smul.addr %s125, 8
          %s127 = scalar_lea.hbm %s0, %s126
          %s128 = sshll.u32 %s127, 4
          %s129 = int_to_ptr.hbm [resolvable:$true] %s128
          %s130 = sshll.u32 %s121, 4
          %s131 = int_to_ptr.vmem [resolvable:$true] %s130
          %136 = dma.hbm_to_vmem [thread:$0]  %s129, 768, %s131, %s118, 128, 128, 8
        $region20: #{tpu_custom_call.1} parent=15 // pred_fallthru
          _
        // Predicated region
        $region21: #{tpu_custom_call.1} parent=15 // pred_check
          %p137 = pneg %p63
        $region22: #{tpu_custom_call.1} parent=15 // pred_check_branch
          %139 = sbr.rel (%p137) target = $region24
        $region23: #{tpu_custom_call.1} parent=15 // pred_region
          %s140 = sand.u32 %s53, 1
          %s141 = scalar_lea.sflag [#allocation6], %s140
          %s142 = sand.u32 %s53, 1
          %s143 = smul.addr %s142, 48
          %s144 = scalar_lea.vmem [#allocation5], %s143
          %s145 = smul.u32 3, %s17
          %147 = vsyncadd %s141, 0
          %s148 = smul.addr %s145, 2
          %s149 = smul.addr %s148, 8
          %s150 = scalar_lea.hbm %s1, %s149
          %s151 = sshll.u32 %s150, 4
          %s152 = int_to_ptr.hbm [resolvable:$true] %s151
          %s153 = sshll.u32 %s144, 4
          %s154 = int_to_ptr.vmem [resolvable:$true] %s153
          %159 = dma.hbm_to_vmem [thread:$0]  %s152, 768, %s154, %s141, 128, 128, 8
        $region24: #{tpu_custom_call.1} parent=15 // pred_fallthru
          _
      $region16: #{tpu_custom_call.1} parent=5 // pred_fallthru
        _
      %p160 = scmp.le.s32.totalorder 1, %s17
      %p161 = scmp.lt.s32.totalorder %s17, 3
      %p162 = pnand %p160, %p161
      %p163 = pneg %p162
      // Predicated region
      $region25: #{tpu_custom_call.1} parent=5 // pred_check
        _
      $region26: #{tpu_custom_call.1} parent=5 // pred_check_branch
        %165 = sbr.rel (%p162) target = $region28
      $region27: #{tpu_custom_call.1} parent=5 // pred_region
        %s166 = ssub.s32 %s17, 1
        %s167 = sand.u32 %s30, 1
        %s168 = scalar_lea.sflag [#allocation3], %s167
        %s169 = sand.u32 %s30, 1
        %s170 = smul.addr %s169, 48
        %s171 = scalar_lea.vmem [#allocation2], %s170
        // Predicated region
        $region29: #{tpu_custom_call.1} parent=27 // pred_check
          %p172 = pneg %p43
        $region30: #{tpu_custom_call.1} parent=27 // pred_check_branch
          %174 = sbr.rel (%p172) target = $region32
        $region31: #{tpu_custom_call.1} parent=27 // pred_region
          %176 = dma.done %s168, 768
        $region32: #{tpu_custom_call.1} parent=27 // pred_fallthru
          _
        %s177 = sand.u32 %s56, 1
        %s178 = scalar_lea.sflag [#allocation6], %s177
        %s179 = sand.u32 %s56, 1
        %s180 = smul.addr %s179, 48
        %s181 = scalar_lea.vmem [#allocation5], %s180
        // Predicated region
        $region33: #{tpu_custom_call.1} parent=27 // pred_check
          %p182 = pneg %p69
        $region34: #{tpu_custom_call.1} parent=27 // pred_check_branch
          %184 = sbr.rel (%p182) target = $region36
        $region35: #{tpu_custom_call.1} parent=27 // pred_region
          %186 = dma.done %s178, 768
        $region36: #{tpu_custom_call.1} parent=27 // pred_fallthru
          _
        %s187 = sand.u32 %s30, 1
        %s188 = scalar_lea.sflag [#allocation3], %s187
        %s189 = sand.u32 %s30, 1
        %s190 = smul.addr %s189, 48
        %s191 = scalar_lea.vmem [#allocation2], %s190
        %p192 = pneg %p43
        %p193 = pneg %p40
        %s194 = sand.u32 %s56, 1
        %s195 = scalar_lea.sflag [#allocation6], %s194
        %s196 = sand.u32 %s56, 1
        %s197 = smul.addr %s196, 48
        %s198 = scalar_lea.vmem [#allocation5], %s197
        %p199 = pneg %p69
        %p200 = pneg %p66
        %p201 = pneg %p95
        %p202 = pneg %p92
        %s203 = sand.u32 %s82, 1
        %s204 = scalar_lea.sflag [#allocation4], %s203
        %s205 = sand.u32 %s82, 1
        %s206 = smul.addr %s205, 8
        %s207 = scalar_lea.vmem [#allocation7], %s206
        %s208 = smul.u32 3, %s22
        %s209 = smul.u32 3, %s22
        %v210 = vld [vmem:[%s171] sm:$0xff]
        %v211 = vld [vmem:[%s171 + $0x8] sm:$0xff]
        %v212 = vld [vmem:[%s171 + $0x10] sm:$0xff]
        %v213 = vld [vmem:[%s171 + $0x18] sm:$0xff]
        %v214 = vld [vmem:[%s171 + $0x20] sm:$0xff]
        %v215 = vld [vmem:[%s171 + $0x28] sm:$0xff]
        %v216 = vld [vmem:[%s181] sm:$0xff]
        %v217 = vld [vmem:[%s181 + $0x8] sm:$0xff]
        %v218 = vld [vmem:[%s181 + $0x10] sm:$0xff]
        %v219 = vld [vmem:[%s181 + $0x18] sm:$0xff]
        %v220 = vld [vmem:[%s181 + $0x20] sm:$0xff]
        %v221 = vld [vmem:[%s181 + $0x28] sm:$0xff]
        %v222 = vsub.f32 %v210, %v216
        %v223 = vsub.f32 %v211, %v217
        %v224 = vsub.f32 %v212, %v218
        %v225 = vsub.f32 %v213, %v219
        %v226 = vsub.f32 %v214, %v220
        %v227 = vsub.f32 %v215, %v221
        %v228 = vand.u32 2147483647, %v222
        %v229 = vand.u32 2147483647, %v223
        %v230 = vand.u32 2147483647, %v224
        %v231 = vand.u32 2147483647, %v225
        %v232 = vand.u32 2147483647, %v226
        %v233 = vand.u32 2147483647, %v227
        %vm234 = vcmask 130048
        %v235 = vsel %vm234, %v228, 0.0
        %v236 = vsel %vm234, %v229, 0.0
        %v237 = vadd.f32 %v235, %v236
        %v238 = vsel %vm234, %v230, 0.0
        %v239 = vadd.f32 %v237, %v238
        %v240 = vsel %vm234, %v231, 0.0
        %v241 = vadd.f32 %v239, %v240
        %v242 = vsel %vm234, %v232, 0.0
        %v243 = vadd.f32 %v241, %v242
        %v244 = vsel %vm234, %v233, 0.0
        %v245 = vadd.f32 %v243, %v244
        %246 = vadd.xlane.f32.xlu0 %v245
        %v247 = vpop.xlane.xlu0 %246
        %v248 = vrot.slane %v247, 4
        %v249 = vadd.f32 %v247, %v248
        %v250 = vrot.slane %v249, 2
        %v251 = vadd.f32 %v249, %v250
        %v252 = vrot.slane %v251, 1
        %v253 = vadd.f32 %v251, %v252
        %s254 = vtos %v253
        %v255 = vlaneseq
        %v256 = vshrl.u32 %v255, 7
        %v257 = vlaneseq
        %v258 = vand.u32 %v257, 127
        %vm259 = vcmp.eq.s32.totalorder %v256, 0
        %vm260 = vcmp.eq.s32.totalorder %v258, 0
        %vm261 = vmand %vm259, %vm260
        %v262 = vstv %s254
        %v263 = vsel %vm261, %v262, 0.0
        %264 = vst [vmem:[%s207] sm:$0xff] %v263
        %s265 = sand.u32 %s82, 1
        %s266 = scalar_lea.sflag [#allocation4], %s265
        %s267 = sand.u32 %s82, 1
        %s268 = smul.addr %s267, 8
        %s269 = scalar_lea.vmem [#allocation7], %s268
        // Predicated region
        $region37: #{tpu_custom_call.1} parent=27 // pred_check
          %p270 = pneg %p92
        $region38: #{tpu_custom_call.1} parent=27 // pred_check_branch
          %272 = sbr.rel (%p270) target = $region40
        $region39: #{tpu_custom_call.1} parent=27 // pred_region
          %274 = vsyncadd %s266, 0
          %s275 = smul.addr %s22, 8
          %s276 = scalar_lea.hbm %s2, %s275
          %s278 = sshll.u32 %s269, 4
          %s279 = int_to_ptr.vmem [resolvable:$true] %s278
          %s280 = sshll.u32 %s276, 4
          %s281 = int_to_ptr.hbm [resolvable:$true] %s280
          %283 = dma.vmem_to_hbm [thread:$0]  %s279, 128, %s281, %s266
        $region40: #{tpu_custom_call.1} parent=27 // pred_fallthru
          _
      $region28: #{tpu_custom_call.1} parent=5 // pred_fallthru
        _
      %p284 = scmp.le.s32.totalorder 2, %s17
      // Predicated region
      $region41: #{tpu_custom_call.1} parent=5 // pred_check
        %p285 = pneg %p284
      $region42: #{tpu_custom_call.1} parent=5 // pred_check_branch
        %287 = sbr.rel (%p285) target = $region44
      $region43: #{tpu_custom_call.1} parent=5 // pred_region
        %s288 = ssub.s32 %s17, 2
        // Predicated region
        $region45: #{tpu_custom_call.1} parent=43 // pred_check
          %p289 = pneg %p98
        $region46: #{tpu_custom_call.1} parent=43 // pred_check_branch
          %291 = sbr.rel (%p289) target = $region48
        $region47: #{tpu_custom_call.1} parent=43 // pred_region
          %s292 = sand.u32 %s83, 1
          %s293 = scalar_lea.sflag [#allocation4], %s292
          %s294 = sand.u32 %s83, 1
          %s295 = smul.addr %s294, 8
          %s296 = scalar_lea.vmem [#allocation7], %s295
          %298 = dma.done %s293, 128
        $region48: #{tpu_custom_call.1} parent=43 // pred_fallthru
          _
      $region44: #{tpu_custom_call.1} parent=5 // pred_fallthru
        _
    $region6: #{tpu_custom_call.1} parent=1 // loop_footer
      %s21 = sadd.s32 1, %s17
    $region7: #{tpu_custom_call.1} parent=1 // loop_footer_branch
      %16 = sbr.rel target = $region3
    $region8: #{tpu_custom_call.1} parent=1 // loop_exit
      _
    %299 = vsyncpa [#allocation3], 1
    %s300 = scalar_lea.sflag [#allocation3], 1
    %301 = vsyncpa %s300, 1
    %302 = vsyncpa [#allocation6], 1
    %s303 = scalar_lea.sflag [#allocation6], 1
    %304 = vsyncpa %s303, 1
    %305 = vsyncpa [#allocation4], 1
    %s306 = scalar_lea.sflag [#allocation4], 1
    %307 = vsyncpa %s306, 1

</llo_original>
